<compile_context>
chip_gen: v7x
topology: tpu7x:2x2x1
jax: 0.10.0
libtpu: 0.0.40
codegen_flags: <defaults>
</compile_context>

<pallas_src>
import jax
import jax.numpy as jnp
from jax import lax
from jax.experimental import pallas as pl
from jax.experimental.pallas import tpu as pltpu

THRES = 0.13


def _round_up(v, m):
    return ((v + m - 1) // m) * m


def _make_kernel(NB, Hp, H, W, thres):
    HW = float(H * W)
    inv_thres = 1.0 / thres

    def kernel(x_ref, edge_ref, mask_ref):
        x = x_ref[...].astype(jnp.float32)        # (R, Wp): NB planes on the row axis
        R, Wp = x.shape

        # ---- separable 3x3 Laplacian.  Each plane has >= 1 padded (zero) row
        # and column, so every roll wraps in a zero == reference zero padding.
        hsum = x + pltpu.roll(x, 1, axis=1) + pltpu.roll(x, Wp - 1, axis=1)
        sum9 = hsum + pltpu.roll(hsum, 1, axis=0) + pltpu.roll(hsum, R - 1, axis=0)
        edge = jnp.abs(9.0 * x - sum9)            # |8*x - sum(neighbours)|

        # ---- zero the padding region so the max-pool cannot leak the spurious
        # |conv| values just outside the valid (H, W) window back into it.
        col = lax.broadcasted_iota(jnp.int32, (1, Wp), 1)
        lrow = lax.broadcasted_iota(jnp.int32, (R, 1), 0) % Hp
        edge = edge * (col < W).astype(jnp.float32) * (lrow < H).astype(jnp.float32)

        # ---- separable 3x3 max pool (stride 1, pad 1).  edge >= 0, so the zero
        # padding / zero wraps are equivalent to the reference's -inf padding.
        hmax = jnp.maximum(edge, jnp.maximum(pltpu.roll(edge, 1, axis=1),
                                             pltpu.roll(edge, Wp - 1, axis=1)))
        pooled = jnp.maximum(hmax, jnp.maximum(pltpu.roll(hmax, 1, axis=0),
                                               pltpu.roll(hmax, R - 1, axis=0)))

        # ---- per-plane mean computed in-kernel (no second HBM read): padding
        # zeros don't affect the sum; divide by the true H*W element count.
        rs = jnp.sum(x, axis=1, keepdims=True)                       # (R, 1)
        ps = jnp.sum(rs.reshape(NB, Hp, 1), axis=1, keepdims=True)   # (NB, 1, 1)
        inv_m = HW / jnp.where(ps != 0.0, ps, 1.0)   # guard all-zero dummy planes
        inv_rows = jnp.broadcast_to(inv_m, (NB, Hp, 1)).reshape(R, 1)

        scaled = pooled * inv_rows
        edge_ref[...] = scaled.astype(edge_ref.dtype)
        # 1 - clamp(p, 0, thres)/thres == max(1 - p/thres, 0)  for p >= 0
        mask_ref[...] = jnp.maximum(1.0 - scaled * inv_thres, 0.0).astype(mask_ref.dtype)

    return kernel


def lap_mask(depth, thres=THRES):
    """depth: (B, 1, H, W) NCHW.  Returns (edge_mask, soft_mask), float32, NCHW."""
    B, C, H, W = depth.shape
    assert C == 1, "LapMask conv kernel is (1,1,3,3): in_channels must be 1"
    BC = B * C

    # Keep narrow float inputs narrow (halves the input HBM read); cast in-kernel.
    if depth.dtype in (jnp.float32, jnp.bfloat16, jnp.float16):
        in_dtype = depth.dtype
    else:
        in_dtype = jnp.float32
    itemsize = 2 if in_dtype in (jnp.bfloat16, jnp.float16) else 4
    x = depth.astype(in_dtype).reshape(BC, H, W)

    # Pad each plane so it has >= 1 padding row and >= 1 padding column and is
    # (8, 128)-aligned: mask-free stencils, unmasked lane-dense loads/stores.
    Hp = _round_up(H + 1, 8)
    Wp = _round_up(W + 1, 128)

    # Planes per grid step: target ~6 MiB block footprint (in + 2 f32 out ->
    # ~12 MiB double-buffered, within scoped VMEM on v5e/v6e/v7x) while keeping
    # at least min(4, BC) grid steps for DMA/compute overlap and core splitting.
    plane_foot = Hp * Wp * (itemsize + 8)      # input plane + two f32 output planes
    target_foot = 6 * 1024 * 1024
    nb_by_bytes = max(1, target_foot // plane_foot)
    min_steps = max(1, min(4, BC))
    nb_by_steps = max(1, BC // min_steps)
    NB = int(max(1, min(nb_by_bytes, nb_by_steps)))
    steps = -(-BC // NB)                       # ceil(BC / NB)
    BCp = steps * NB                           # ragged BC -> all-zero dummy planes
    # TODO(synk): for very large planes (plane_foot >> target_foot, NB == 1) add
    # row-strip tiling with a 2-row halo instead of whole-plane blocks.

    xp = jnp.pad(x, ((0, BCp - BC), (0, Hp - H), (0, Wp - W)))
    x2 = xp.reshape(BCp * Hp, Wp)
    R = NB * Hp

    row_spec = pl.BlockSpec((R, Wp), lambda i: (i, 0))

    edge2, mask2 = pl.pallas_call(
        _make_kernel(NB, Hp, H, W, thres),
        out_shape=(
            jax.ShapeDtypeStruct((BCp * Hp, Wp), jnp.float32),
            jax.ShapeDtypeStruct((BCp * Hp, Wp), jnp.float32),
        ),
        grid_spec=pltpu.PrefetchScalarGridSpec(
            num_scalar_prefetch=0,
            grid=(steps,),
            in_specs=[row_spec],
            out_specs=[row_spec, row_spec],
        ),
        compiler_params=pltpu.CompilerParams(
            # TODO(synk): try pltpu.CORE_PARALLEL here on v7x (2 TensorCores).
            dimension_semantics=("parallel",),
            vmem_limit_bytes=32 * 1024 * 1024,
        ),
    )(x2)

    # TODO(synk): for unaligned H/W the pad above and this crop are extra HBM
    # copy passes; fuse the crop (and optionally bf16 outputs) into the consumer.
    edge = edge2.reshape(BCp, Hp, Wp)[:BC, :H, :W].reshape(B, C, H, W)
    mask = mask2.reshape(BCp, Hp, Wp)[:BC, :H, :W].reshape(B, C, H, W)
    return edge, mask


def _reference(depth, thres=THRES):
    """Pure-JAX reference mirroring the PyTorch forward."""
    m = depth.mean(axis=2, keepdims=True).mean(axis=3, keepdims=True)
    d = depth / m
    kern = jnp.array([[-1., -1., -1.], [-1., 8., -1.], [-1., -1., -1.]],
                     jnp.float32).reshape(1, 1, 3, 3)
    conv = lax.conv_general_dilated(d, kern, window_strides=(1, 1),
                                    padding=((1, 1), (1, 1)),
                                    dimension_numbers=("NCHW", "OIHW", "NCHW"))
    edge = jnp.abs(conv)
    pooled = lax.reduce_window(edge, -jnp.inf, lax.max,
                               window_dimensions=(1, 1, 3, 3),
                               window_strides=(1, 1, 1, 1),
                               padding=((0, 0), (0, 0), (1, 1), (1, 1)))
    return pooled, 1.0 - jnp.clip(pooled, 0.0, thres) / thres


if __name__ == "__main__":
    key = jax.random.PRNGKey(0)
    B, C, H, W = 2, 1, 16, 16
    # positive depths (like a depth map), deterministic
    depth = jax.random.uniform(key, (B, C, H, W), jnp.float32,
                               minval=0.1, maxval=10.0)

    edge, mask = lap_mask(depth)
    jax.block_until_ready(edge)
    jax.block_until_ready(mask)

    ref_edge, ref_mask = _reference(depth)
    assert jnp.allclose(edge, ref_edge, atol=1e-4, rtol=1e-4)
    assert jnp.allclose(mask, ref_mask, atol=1e-4, rtol=1e-4)

    print("KERNEL_OK")
</pallas_src>

<mosaic_0001>
module attributes {stable_mosaic.version = 11 : i64} {
  func.func @kernel(%arg0: i32, %arg1: memref<24x128xf32, #tpu.memory_space<vmem>>, %arg2: memref<24x128xf32, #tpu.memory_space<vmem>>, %arg3: memref<24x128xf32, #tpu.memory_space<vmem>>) attributes {dimension_semantics = [#tpu.dimension_semantics<parallel>], iteration_bounds = array<i64: 2>, scalar_prefetch = 0 : i64, scratch_operands = 0 : i64, tpu.core_type = #tpu.core_type<tc>, window_params = [{transform_indices = @transform_0, window_bounds = array<i64: 24, 128>}, {transform_indices = @transform_1, window_bounds = array<i64: 24, 128>}, {transform_indices = @transform_2, window_bounds = array<i64: 24, 128>}]} {
    %c0 = arith.constant 0 : index
    %c0_0 = arith.constant 0 : index
    %0 = vector.load %arg1[%c0, %c0_0] : memref<24x128xf32, #tpu.memory_space<vmem>>, vector<24x128xf32>
    %c1_i32 = arith.constant 1 : i32
    %1 = tpu.dynamic_rotate %0 by %c1_i32 dim 1 : vector<24x128xf32>, i32 -> vector<24x128xf32>
    %2 = arith.addf %0, %1 : vector<24x128xf32>
    %c127_i32 = arith.constant 127 : i32
    %3 = tpu.dynamic_rotate %0 by %c127_i32 dim 1 : vector<24x128xf32>, i32 -> vector<24x128xf32>
    %4 = arith.addf %2, %3 : vector<24x128xf32>
    %c1_i32_1 = arith.constant 1 : i32
    %5 = tpu.dynamic_rotate %4 by %c1_i32_1 dim 0 : vector<24x128xf32>, i32 -> vector<24x128xf32>
    %6 = arith.addf %4, %5 : vector<24x128xf32>
    %c23_i32 = arith.constant 23 : i32
    %7 = tpu.dynamic_rotate %4 by %c23_i32 dim 0 : vector<24x128xf32>, i32 -> vector<24x128xf32>
    %8 = arith.addf %6, %7 : vector<24x128xf32>
    %cst = arith.constant 9.000000e+00 : f32
    %9 = vector.broadcast %cst : f32 to vector<24x128xf32>
    %10 = arith.mulf %9, %0 : vector<24x128xf32>
    %11 = arith.subf %10, %8 : vector<24x128xf32>
    %12 = math.absf %11 : vector<24x128xf32>
    %13 = tpu.iota {dimensions = array<i32: 1>} : vector<1x128xi32>
    %14 = tpu.iota {dimensions = array<i32: 0>} : vector<24x1xi32>
    %c24_i32 = arith.constant 24 : i32
    %c0_i32 = arith.constant 0 : i32
    %15 = arith.cmpi eq, %c24_i32, %c0_i32 : i32
    %c1_i32_2 = arith.constant 1 : i32
    %16 = arith.select %15, %c1_i32_2, %c24_i32 : i32
    %17 = vector.broadcast %16 : i32 to vector<24x1xi32>
    %18 = arith.remsi %14, %17 : vector<24x1xi32>
    %c0_i32_3 = arith.constant 0 : i32
    %19 = vector.broadcast %c0_i32_3 : i32 to vector<24x1xi32>
    %20 = arith.cmpi ne, %18, %19 : vector<24x1xi32>
    %c0_i32_4 = arith.constant 0 : i32
    %21 = vector.broadcast %c0_i32_4 : i32 to vector<24x1xi32>
    %22 = arith.cmpi slt, %18, %21 : vector<24x1xi32>
    %c0_i32_5 = arith.constant 0 : i32
    %23 = arith.cmpi slt, %16, %c0_i32_5 : i32
    %24 = vector.broadcast %23 : i1 to vector<24x1xi1>
    %25 = vector.broadcast %24 : vector<24x1xi1> to vector<24x1xi1>
    %26 = arith.xori %22, %25 : vector<24x1xi1>
    %27 = arith.andi %26, %20 : vector<24x1xi1>
    %28 = vector.broadcast %16 : i32 to vector<24x1xi32>
    %29 = arith.addi %18, %28 : vector<24x1xi32>
    %30 = arith.select %27, %29, %18 : vector<24x1xi1>, vector<24x1xi32>
    %c16_i32 = arith.constant 16 : i32
    %31 = vector.broadcast %c16_i32 : i32 to vector<1x128xi32>
    %32 = arith.cmpi slt, %13, %31 : vector<1x128xi32>
    %33 = arith.extui %32 : vector<1x128xi1> to vector<1x128xi32>
    %34 = arith.sitofp %33 : vector<1x128xi32> to vector<1x128xf32>
    %35 = vector.broadcast %34 : vector<1x128xf32> to vector<24x128xf32>
    %36 = arith.mulf %12, %35 : vector<24x128xf32>
    %c16_i32_6 = arith.constant 16 : i32
    %37 = vector.broadcast %c16_i32_6 : i32 to vector<24x1xi32>
    %38 = arith.cmpi slt, %30, %37 : vector<24x1xi32>
    %39 = arith.extui %38 : vector<24x1xi1> to vector<24x1xi32>
    %40 = arith.sitofp %39 : vector<24x1xi32> to vector<24x1xf32>
    %41 = vector.broadcast %40 : vector<24x1xf32> to vector<24x128xf32>
    %42 = arith.mulf %36, %41 : vector<24x128xf32>
    %c1_i32_7 = arith.constant 1 : i32
    %43 = tpu.dynamic_rotate %42 by %c1_i32_7 dim 1 : vector<24x128xf32>, i32 -> vector<24x128xf32>
    %c127_i32_8 = arith.constant 127 : i32
    %44 = tpu.dynamic_rotate %42 by %c127_i32_8 dim 1 : vector<24x128xf32>, i32 -> vector<24x128xf32>
    %45 = arith.maximumf %43, %44 : vector<24x128xf32>
    %46 = arith.maximumf %42, %45 : vector<24x128xf32>
    %c1_i32_9 = arith.constant 1 : i32
    %47 = tpu.dynamic_rotate %46 by %c1_i32_9 dim 0 : vector<24x128xf32>, i32 -> vector<24x128xf32>
    %c23_i32_10 = arith.constant 23 : i32
    %48 = tpu.dynamic_rotate %46 by %c23_i32_10 dim 0 : vector<24x128xf32>, i32 -> vector<24x128xf32>
    %49 = arith.maximumf %47, %48 : vector<24x128xf32>
    %50 = arith.maximumf %46, %49 : vector<24x128xf32>
    %cst_11 = arith.constant dense<0.000000e+00> : vector<24xf32>
    %51 = vector.multi_reduction <add>, %0, %cst_11 [1] : vector<24x128xf32> to vector<24xf32>
    %52 = vector.shape_cast %51 : vector<24xf32> to vector<24x1xf32>
    %53 = vector.shape_cast %52 : vector<24x1xf32> to vector<1x24x1xf32>
    %cst_12 = arith.constant dense<0.000000e+00> : vector<1x1xf32>
    %54 = vector.multi_reduction <add>, %53, %cst_12 [1] : vector<1x24x1xf32> to vector<1x1xf32>
    %55 = vector.shape_cast %54 : vector<1x1xf32> to vector<1x1x1xf32>
    %cst_13 = arith.constant 0.000000e+00 : f32
    %56 = vector.broadcast %cst_13 : f32 to vector<1x1x1xf32>
    %57 = arith.cmpf one, %55, %56 : vector<1x1x1xf32>
    %cst_14 = arith.constant 1.000000e+00 : f32
    %58 = vector.broadcast %cst_14 : f32 to vector<1x1x1xf32>
    %59 = arith.select %57, %55, %58 : vector<1x1x1xi1>, vector<1x1x1xf32>
    %cst_15 = arith.constant 2.560000e+02 : f32
    %60 = vector.broadcast %cst_15 : f32 to vector<1x1x1xf32>
    %61 = arith.divf %60, %59 : vector<1x1x1xf32>
    %62 = vector.shape_cast %61 : vector<1x1x1xf32> to vector<1x1x1xf32>
    %63 = vector.broadcast %62 : vector<1x1x1xf32> to vector<1x24x1xf32>
    %64 = vector.shape_cast %63 : vector<1x24x1xf32> to vector<24x1xf32>
    %65 = vector.broadcast %64 : vector<24x1xf32> to vector<24x128xf32>
    %66 = arith.mulf %50, %65 : vector<24x128xf32>
    %c0_16 = arith.constant 0 : index
    %c0_17 = arith.constant 0 : index
    %67 = vector.load %arg2[%c0_16, %c0_17] : memref<24x128xf32, #tpu.memory_space<vmem>>, vector<24x128xf32>
    tpu.vector_store %arg2[%c0_16, %c0_17], %66 {strides = array<i32>} : memref<24x128xf32, #tpu.memory_space<vmem>>, vector<24x128xf32>,
    %cst_18 = arith.constant 7.69230747 : f32
    %68 = vector.broadcast %cst_18 : f32 to vector<24x128xf32>
    %69 = arith.mulf %66, %68 : vector<24x128xf32>
    %cst_19 = arith.constant 1.000000e+00 : f32
    %70 = vector.broadcast %cst_19 : f32 to vector<24x128xf32>
    %71 = arith.subf %70, %69 : vector<24x128xf32>
    %cst_20 = arith.constant 0.000000e+00 : f32
    %72 = vector.broadcast %cst_20 : f32 to vector<24x128xf32>
    %73 = arith.maximumf %71, %72 : vector<24x128xf32>
    %c0_21 = arith.constant 0 : index
    %c0_22 = arith.constant 0 : index
    %74 = vector.load %arg3[%c0_21, %c0_22] : memref<24x128xf32, #tpu.memory_space<vmem>>, vector<24x128xf32>
    tpu.vector_store %arg3[%c0_21, %c0_22], %73 {strides = array<i32>} : memref<24x128xf32, #tpu.memory_space<vmem>>, vector<24x128xf32>,
    return
  }
  func.func @transform_0(%arg0: i32) -> (i32, i32) {
    %c0_i32 = arith.constant 0 : i32
    %c0_i32_0 = arith.constant 0 : i32
    return %arg0, %c0_i32 : i32, i32
  }
  func.func @transform_1(%arg0: i32) -> (i32, i32) {
    %c0_i32 = arith.constant 0 : i32
    %c0_i32_0 = arith.constant 0 : i32
    return %arg0, %c0_i32 : i32, i32
  }
  func.func @transform_2(%arg0: i32) -> (i32, i32) {
    %c0_i32 = arith.constant 0 : i32
    %c0_i32_0 = arith.constant 0 : i32
    return %arg0, %c0_i32 : i32, i32
  }
}

</mosaic_0001>

<llo_original>
// kernel: tpu_custom_call.1
$region0: #{tpu_custom_call.1}
  #allocation0 [shape = 'u32[]', space=smem, size = 0x4, offset = 0x4, fixed_abs, tag = 'smem constant byte address 0x4 - core index']
  #allocation1 [shape = 'u32[144,128]{1,0:T(1,128)}', space=vmem, size = 0x12000, scoped, tag = 'internal scratch']
  %s0 = inlined_call_operand.hbm [shape: f32[48,128], index: 0, kind: input, shape index: {}]
  %s1 = inlined_call_operand.hbm [shape: f32[48,128], index: 1, kind: output, shape index: {0}]
  %s2 = inlined_call_operand.hbm [shape: f32[48,128], index: 2, kind: output, shape index: {1}]
  %3 = xla_tuple %s1, %s2
  %s4 = sld [smem:[#allocation0]]
  $region49: #{tpu_custom_call.1} parent=0
    _
  %s6 = ssub.s32 1, %s4
  %s7 = scalar_select 0, %s6, %s4
  $region1: #{tpu_custom_call.1} parent=0
    #allocation2 [shape = 'u8[24576]{0}', space=vmem, size = 0x6000, scoped, tag = 'input window, operand 0']
    #allocation3 [shape = 's32[2]{0}', space=sflag, size = 0x8, scoped, tag = 'scoped memory for tpu_custom_call.1']
    #allocation4 [shape = 's32[2]{0}', space=sflag, size = 0x8, scoped, tag = 'scoped memory for tpu_custom_call.1']
    #allocation5 [shape = 'u8[24576]{0}', space=vmem, size = 0x6000, scoped, tag = 'output window, operand 0']
    #allocation6 [shape = 'u8[24576]{0}', space=vmem, size = 0x6000, scoped, tag = 'output window, operand 1']
    #allocation7 [shape = 's32[2]{0}', space=sflag, size = 0x8, scoped, tag = 'scoped memory for tpu_custom_call.1']
    %8 = vsyncpa [#allocation3], 0
    %s9 = scalar_lea.sflag [#allocation3], 1
    %10 = vsyncpa %s9, 0
    %11 = vsyncpa [#allocation4], 0
    %s12 = scalar_lea.sflag [#allocation4], 1
    %13 = vsyncpa %s12, 0
    %14 = vsyncpa [#allocation7], 0
    %s15 = scalar_lea.sflag [#allocation7], 1
    %16 = vsyncpa %s15, 0
    loop: start=0, step=1, limit=4
    $region2: #{tpu_custom_call.1} parent=1 // loop_pre_header
      _
    $region3: #{tpu_custom_call.1} parent=1 // loop_header
      %s18 = sphi 0, %s22
      %p19 = scmp.ge.s32.totalorder %s18, 4
      %s28 = sphi 0, %s30
      %s31 = sphi 0, %s28
      %s32 = sphi 0, %s31
      %s48 = sphi 0, %s32
      %s54 = sphi 0, %s56
      %s57 = sphi 0, %s54
      %s58 = sphi 0, %s57
      %s74 = sphi 0, %s58
      %s80 = sphi 0, %s82
      %s83 = sphi 0, %s80
      %s84 = sphi 0, %s83
      %s100 = sphi 0, %s84
    $region4: #{tpu_custom_call.1} parent=1 // loop_header_branch
      %21 = sbr.rel (%p19) target = $region8
    $region5: #{tpu_custom_call.1} parent=1 // loop_body
      %s23 = ssub.s32 %s18, 1
      %s24 = ssub.s32 %s18, 2
      %s25 = sadd.s32 %s18, 1
      %s26 = ssub.s32 %s18, %s25
      %p27 = scmp.eq.s32.totalorder %s26, 0
      %s29 = sadd.s32 %s28, 1
      %s30 = scalar_select %p27, %s28, %s29
      %p33 = pneg %p27
      %p34 = scmp.eq.s32.totalorder %s18, 1
      %p35 = por %p33, %p34
      %p36 = scmp.ne.s32.totalorder %s28, %s31
      %p37 = scmp.eq.s32.totalorder %s18, 0
      %p38 = por %p36, %p37
      %p39 = scmp.ne.s32.totalorder %s28, %s31
      %p40 = scmp.eq.s32.totalorder %s23, 1
      %p41 = por %p39, %p40
      %p42 = scmp.ne.s32.totalorder %s31, %s32
      %p43 = scmp.eq.s32.totalorder %s23, 0
      %p44 = por %p42, %p43
      %p45 = scmp.ne.s32.totalorder %s31, %s32
      %p46 = scmp.eq.s32.totalorder %s24, 1
      %p47 = por %p45, %p46
      %p49 = scmp.ne.s32.totalorder %s32, %s48
      %p50 = scmp.eq.s32.totalorder %s24, 0
      %p51 = por %p49, %p50
      %s52 = ssub.s32 %s18, %s25
      %p53 = scmp.eq.s32.totalorder %s52, 0
      %s55 = sadd.s32 %s54, 1
      %s56 = scalar_select %p53, %s54, %s55
      %p59 = pneg %p53
      %p60 = scmp.eq.s32.totalorder %s18, 1
      %p61 = por %p59, %p60
      %p62 = scmp.ne.s32.totalorder %s54, %s57
      %p63 = scmp.eq.s32.totalorder %s18, 0
      %p64 = por %p62, %p63
      %p65 = scmp.ne.s32.totalorder %s54, %s57
      %p66 = scmp.eq.s32.totalorder %s23, 1
      %p67 = por %p65, %p66
      %p68 = scmp.ne.s32.totalorder %s57, %s58
      %p69 = scmp.eq.s32.totalorder %s23, 0
      %p70 = por %p68, %p69
      %p71 = scmp.ne.s32.totalorder %s57, %s58
      %p72 = scmp.eq.s32.totalorder %s24, 1
      %p73 = por %p71, %p72
      %p75 = scmp.ne.s32.totalorder %s58, %s74
      %p76 = scmp.eq.s32.totalorder %s24, 0
      %p77 = por %p75, %p76
      %s78 = ssub.s32 %s18, %s25
      %p79 = scmp.eq.s32.totalorder %s78, 0
      %s81 = sadd.s32 %s80, 1
      %s82 = scalar_select %p79, %s80, %s81
      %p85 = pneg %p79
      %p86 = scmp.eq.s32.totalorder %s18, 1
      %p87 = por %p85, %p86
      %p88 = scmp.ne.s32.totalorder %s80, %s83
      %p89 = scmp.eq.s32.totalorder %s18, 0
      %p90 = por %p88, %p89
      %p91 = scmp.ne.s32.totalorder %s80, %s83
      %p92 = scmp.eq.s32.totalorder %s23, 1
      %p93 = por %p91, %p92
      %p94 = scmp.ne.s32.totalorder %s83, %s84
      %p95 = scmp.eq.s32.totalorder %s23, 0
      %p96 = por %p94, %p95
      %p97 = scmp.ne.s32.totalorder %s83, %s84
      %p98 = scmp.eq.s32.totalorder %s24, 1
      %p99 = por %p97, %p98
      %p101 = scmp.ne.s32.totalorder %s84, %s100
      %p102 = scmp.eq.s32.totalorder %s24, 0
      %p103 = por %p101, %p102
      %p104 = scmp.le.s32.totalorder 1, %s18
      %p105 = scmp.lt.s32.totalorder %s18, 3
      %p106 = pnand %p104, %p105
      %p107 = pneg %p106
      // Predicated region
      $region9: #{tpu_custom_call.1} parent=5 // pred_check
        _
      $region10: #{tpu_custom_call.1} parent=5 // pred_check_branch
        %109 = sbr.rel (%p106) target = $region12
      $region11: #{tpu_custom_call.1} parent=5 // pred_region
        %s110 = ssub.s32 %s18, 1
      $region12: #{tpu_custom_call.1} parent=5 // pred_fallthru
        _
      %p111 = scmp.lt.s32.totalorder %s18, 2
      // Predicated region
      $region13: #{tpu_custom_call.1} parent=5 // pred_check
        %p112 = pneg %p111
      $region14: #{tpu_custom_call.1} parent=5 // pred_check_branch
        %114 = sbr.rel (%p112) target = $region16
      $region15: #{tpu_custom_call.1} parent=5 // pred_region
        // Predicated region
        $region17: #{tpu_custom_call.1} parent=15 // pred_check
          %p115 = pneg %p38
        $region18: #{tpu_custom_call.1} parent=15 // pred_check_branch
          %117 = sbr.rel (%p115) target = $region20
        $region19: #{tpu_custom_call.1} parent=15 // pred_region
          %s118 = sand.u32 %s28, 1
          %s119 = scalar_lea.sflag [#allocation3], %s118
          %s120 = sand.u32 %s28, 1
          %s121 = smul.addr %s120, 24
          %s122 = scalar_lea.vmem [#allocation2], %s121
          %s123 = smul.u32 3, %s18
          %s125 = ssub.s32 384, 384
          %126 = vsyncadd %s119, %s125
          %s127 = smul.addr %s123, 128
          %s128 = scalar_lea.hbm %s0, %s127
          %s129 = sshll.u32 %s122, 4
          %s130 = int_to_ptr.vmem [resolvable:$true] %s129
          %135 = dma.hbm_to_vmem [thread:$0]  %s128, 384, %s130, %s119, 128, 128, 8
        $region20: #{tpu_custom_call.1} parent=15 // pred_fallthru
          _
      $region16: #{tpu_custom_call.1} parent=5 // pred_fallthru
        _
      %p136 = scmp.le.s32.totalorder 1, %s18
      %p137 = scmp.lt.s32.totalorder %s18, 3
      %p138 = pnand %p136, %p137
      %p139 = pneg %p138
      // Predicated region
      $region21: #{tpu_custom_call.1} parent=5 // pred_check
        _
      $region22: #{tpu_custom_call.1} parent=5 // pred_check_branch
        %141 = sbr.rel (%p138) target = $region24
      $region23: #{tpu_custom_call.1} parent=5 // pred_region
        %s142 = ssub.s32 %s18, 1
        %s143 = sand.u32 %s31, 1
        %s144 = scalar_lea.sflag [#allocation3], %s143
        %s145 = sand.u32 %s31, 1
        %s146 = smul.addr %s145, 24
        %s147 = scalar_lea.vmem [#allocation2], %s146
        // Predicated region
        $region25: #{tpu_custom_call.1} parent=23 // pred_check
          %p148 = pneg %p44
        $region26: #{tpu_custom_call.1} parent=23 // pred_check_branch
          %150 = sbr.rel (%p148) target = $region28
        $region27: #{tpu_custom_call.1} parent=23 // pred_region
          %151 = dma.done %s144, 384
        $region28: #{tpu_custom_call.1} parent=23 // pred_fallthru
          _
        %s152 = sand.u32 %s31, 1
        %s153 = scalar_lea.sflag [#allocation3], %s152
        %s154 = sand.u32 %s31, 1
        %s155 = smul.addr %s154, 24
        %s156 = scalar_lea.vmem [#allocation2], %s155
        %p157 = pneg %p44
        %p158 = pneg %p41
        %p159 = pneg %p70
        %p160 = pneg %p67
        %s161 = sand.u32 %s57, 1
        %s162 = scalar_lea.sflag [#allocation4], %s161
        %s163 = sand.u32 %s57, 1
        %s164 = smul.addr %s163, 24
        %s165 = scalar_lea.vmem [#allocation5], %s164
        %p166 = pneg %p96
        %p167 = pneg %p93
        %s168 = sand.u32 %s83, 1
        %s169 = scalar_lea.sflag [#allocation7], %s168
        %s170 = sand.u32 %s83, 1
        %s171 = smul.addr %s170, 24
        %s172 = scalar_lea.vmem [#allocation6], %s171
        %s173 = smul.u32 3, %s23
        %s174 = smul.u32 3, %s23
        %s175 = smul.u32 3, %s23
        %v176 = vld [vmem:[%s147] sm:$0xff]
        %v177 = vld [vmem:[%s147 + $0x8] sm:$0xff]
        %v178 = vld [vmem:[%s147 + $0x10] sm:$0xff]
        %179 = vrot.lane.b32.xlu0 %v176, 1
        %v180 = vpop.permute.xlu0 %179
        %181 = vrot.lane.b32.xlu0 %v177, 1
        %v182 = vpop.permute.xlu0 %181
        %183 = vrot.lane.b32.xlu0 %v178, 1
        %v184 = vpop.permute.xlu0 %183
        %v185 = vadd.f32 %v176, %v180
        %v186 = vadd.f32 %v177, %v182
        %v187 = vadd.f32 %v178, %v184
        %188 = vrot.lane.b32.xlu0 %v176, 127
        %v189 = vpop.permute.xlu0 %188
        %190 = vrot.lane.b32.xlu0 %v177, 127
        %v191 = vpop.permute.xlu0 %190
        %192 = vrot.lane.b32.xlu0 %v178, 127
        %v193 = vpop.permute.xlu0 %192
        %v194 = vadd.f32 %v185, %v189
        %v195 = vadd.f32 %v186, %v191
        %v196 = vadd.f32 %v187, %v193
        %v197 = vrot.slane %v194, 7
        %v198 = vrot.slane %v195, 7
        %v199 = vrot.slane %v196, 7
        %v200 = vlaneseq
        %v201 = vshrl.u32 %v200, 7
        %vm202 = vcmp.lt.s32.totalorder %v201, 1
        %v203 = vsel %vm202, %v198, %v199
        %v204 = vsel %vm202, %v197, %v198
        %v205 = vsel %vm202, %v199, %v197
        %v206 = vadd.f32 %v194, %v205
        %v207 = vadd.f32 %v195, %v204
        %v208 = vadd.f32 %v196, %v203
        %v209 = vrot.slane %v194, 1
        %v210 = vrot.slane %v195, 1
        %v211 = vrot.slane %v196, 1
        %vm212 = vcmp.lt.s32.totalorder %v201, 7
        %v213 = vsel %vm212, %v210, %v211
        %v214 = vsel %vm212, %v209, %v210
        %v215 = vsel %vm212, %v211, %v209
        %v216 = vadd.f32 %v206, %v214
        %v217 = vadd.f32 %v207, %v213
        %v218 = vadd.f32 %v208, %v215
        %v219 = vmul.f32 %v176, 9.0
        %v220 = vmul.f32 %v177, 9.0
        %v221 = vmul.f32 %v178, 9.0
        %v222 = vsub.f32 %v219, %v216
        %v223 = vsub.f32 %v220, %v217
        %v224 = vsub.f32 %v221, %v218
        %v225 = vand.u32 2147483647, %v222
        %v226 = vand.u32 2147483647, %v223
        %v227 = vand.u32 2147483647, %v224
        %v228 = vlaneseq
        %v229 = vand.u32 %v228, 127
        %v230 = vadd.s32 %v201, 8
        %v231 = vadd.s32 %v201, 16
        %vm232 = vcmp.lt.s32.totalorder %v201, 0
        %v233 = vsub.s32 0, %v201
        %v234 = vsel %vm232, %v233, %v201
        %v235 = vmul.u32.u64.compose %v234, 2863311531
        %v236 = vextract.low.u32 %v235
        %v237 = vextract.high.u32 %v235
        %v238 = vshrl.u32 %v237, 4
        %v239 = vmul.u32 %v238, 24
        %v240 = vsub.s32 %v234, %v239
        %v241 = vsub.s32 0, %v240
        %v242 = vsel %vm232, %v241, %v240
        %vm243 = vcmp.lt.s32.totalorder %v230, 0
        %v244 = vsub.s32 0, %v230
        %v245 = vsel %vm243, %v244, %v230
        %v246 = vmul.u32.u64.compose %v245, 2863311531
        %v247 = vextract.low.u32 %v246
        %v248 = vextract.high.u32 %v246
        %v249 = vshrl.u32 %v248, 4
        %v250 = vmul.u32 %v249, 24
        %v251 = vsub.s32 %v245, %v250
        %v252 = vsub.s32 0, %v251
        %v253 = vsel %vm243, %v252, %v251
        %vm254 = vcmp.lt.s32.totalorder %v231, 0
        %v255 = vsub.s32 0, %v231
        %v256 = vsel %vm254, %v255, %v231
        %v257 = vmul.u32.u64.compose %v256, 2863311531
        %v258 = vextract.low.u32 %v257
        %v259 = vextract.high.u32 %v257
        %v260 = vshrl.u32 %v259, 4
        %v261 = vmul.u32 %v260, 24
        %v262 = vsub.s32 %v256, %v261
        %v263 = vsub.s32 0, %v262
        %v264 = vsel %vm254, %v263, %v262
        %vm265 = vcmp.ne.s32.totalorder %v242, 0
        %vm266 = vcmp.ne.s32.totalorder %v253, 0
        %vm267 = vcmp.ne.s32.totalorder %v264, 0
        %vm268 = vcmp.lt.s32.totalorder %v242, 0
        %vm269 = vcmp.lt.s32.totalorder %v253, 0
        %vm270 = vcmp.lt.s32.totalorder %v264, 0
        %vm271 = vmand %vm268, %vm265
        %vm272 = vmand %vm269, %vm266
        %vm273 = vmand %vm270, %vm267
        %v274 = vadd.s32 %v242, 24
        %v275 = vadd.s32 %v253, 24
        %v276 = vadd.s32 %v264, 24
        %v277 = vsel %vm271, %v274, %v242
        %v278 = vsel %vm272, %v275, %v253
        %v279 = vsel %vm273, %v276, %v264
        %vm280 = vcmp.lt.s32.totalorder %v229, 16
        %v281 = vsel %vm280, 1, 0
        %v282 = vcvt.s32.f32 %v281
        %v283 = vmul.f32 %v225, %v282
        %v284 = vmul.f32 %v226, %v282
        %v285 = vmul.f32 %v227, %v282
        %vm286 = vcmp.lt.s32.totalorder %v277, 16
        %vm287 = vcmp.lt.s32.totalorder %v278, 16
        %vm288 = vcmp.lt.s32.totalorder %v279, 16
        %v289 = vsel %vm286, 1, 0
        %v290 = vsel %vm287, 1, 0
        %v291 = vsel %vm288, 1, 0
        %v292 = vcvt.s32.f32 %v289
        %v293 = vcvt.s32.f32 %v290
        %v294 = vcvt.s32.f32 %v291
        %v295 = vmul.f32 %v283, %v292
        %v296 = vmul.f32 %v284, %v293
        %v297 = vmul.f32 %v285, %v294
        %298 = vrot.lane.b32.xlu0 %v295, 1
        %v299 = vpop.permute.xlu0 %298
        %300 = vrot.lane.b32.xlu0 %v296, 1
        %v301 = vpop.permute.xlu0 %300
        %302 = vrot.lane.b32.xlu0 %v297, 1
        %v303 = vpop.permute.xlu0 %302
        %304 = vrot.lane.b32.xlu0 %v295, 127
        %v305 = vpop.permute.xlu0 %304
        %306 = vrot.lane.b32.xlu0 %v296, 127
        %v307 = vpop.permute.xlu0 %306
        %308 = vrot.lane.b32.xlu0 %v297, 127
        %v309 = vpop.permute.xlu0 %308
        %v310 = vmax.f32 %v299, %v305
        %v311 = vmax.f32 %v301, %v307
        %v312 = vmax.f32 %v303, %v309
        %v313 = vmax.f32 %v295, %v310
        %v314 = vmax.f32 %v296, %v311
        %v315 = vmax.f32 %v297, %v312
        %v316 = vrot.slane %v313, 7
        %v317 = vrot.slane %v314, 7
        %v318 = vrot.slane %v315, 7
        %v319 = vsel %vm202, %v317, %v318
        %v320 = vsel %vm202, %v316, %v317
        %v321 = vsel %vm202, %v318, %v316
        %v322 = vrot.slane %v313, 1
        %v323 = vrot.slane %v314, 1
        %v324 = vrot.slane %v315, 1
        %v325 = vsel %vm212, %v323, %v324
        %v326 = vsel %vm212, %v322, %v323
        %v327 = vsel %vm212, %v324, %v322
        %v328 = vmax.f32 %v321, %v326
        %v329 = vmax.f32 %v320, %v325
        %v330 = vmax.f32 %v319, %v327
        %v331 = vmax.f32 %v313, %v328
        %v332 = vmax.f32 %v314, %v329
        %v333 = vmax.f32 %v315, %v330
        %334 = vadd.xlane.f32.xlu0 %v176
        %v335 = vpop.xlane.xlu0 %334
        %336 = vadd.xlane.f32.xlu0 %v177
        %v337 = vpop.xlane.xlu0 %336
        %338 = vadd.xlane.f32.xlu0 %v178
        %v339 = vpop.xlane.xlu0 %338
        %v340 = vadd.f32 %v335, %v337
        %v341 = vadd.f32 %v340, %v339
        %v342 = vrot.slane %v341, 4
        %v343 = vadd.f32 %v341, %v342
        %v344 = vrot.slane %v343, 2
        %v345 = vadd.f32 %v343, %v344
        %v346 = vrot.slane %v345, 1
        %v347 = vadd.f32 %v345, %v346
        %vm348 = vcmp.ne.f32.partialorder %v347, 0.0
        %v349 = vsel %vm348, %v347, 1.0
        %v350 = vrcp.pop %v349
        %v351 = vmul.f32 256.0, %v350
        %v352 = vmul.f32 %v331, %v351
        %v353 = vmul.f32 %v332, %v351
        %v354 = vmul.f32 %v333, %v351
        %355 = vst [vmem:[%s165] sm:$0xff] %v352
        %356 = vst [vmem:[%s165 + $0x8] sm:$0xff] %v353
        %357 = vst [vmem:[%s165 + $0x10] sm:$0xff] %v354
        %v358 = vmul.f32 %v352, 7.6923075
        %v359 = vmul.f32 %v353, 7.6923075
        %v360 = vmul.f32 %v354, 7.6923075
        %v361 = vsub.f32 1.0, %v358
        %v362 = vsub.f32 1.0, %v359
        %v363 = vsub.f32 1.0, %v360
        %v364 = vmax.f32 %v361, 0.0
        %v365 = vmax.f32 %v362, 0.0
        %v366 = vmax.f32 %v363, 0.0
        %367 = vst [vmem:[%s172] sm:$0xff] %v364
        %368 = vst [vmem:[%s172 + $0x8] sm:$0xff] %v365
        %369 = vst [vmem:[%s172 + $0x10] sm:$0xff] %v366
        %s370 = sand.u32 %s57, 1
        %s371 = scalar_lea.sflag [#allocation4], %s370
        %s372 = sand.u32 %s57, 1
        %s373 = smul.addr %s372, 24
        %s374 = scalar_lea.vmem [#allocation5], %s373
        %s375 = sand.u32 %s83, 1
        %s376 = scalar_lea.sflag [#allocation7], %s375
        %s377 = sand.u32 %s83, 1
        %s378 = smul.addr %s377, 24
        %s379 = scalar_lea.vmem [#allocation6], %s378
        // Predicated region
        $region29: #{tpu_custom_call.1} parent=23 // pred_check
          %p380 = pneg %p67
        $region30: #{tpu_custom_call.1} parent=23 // pred_check_branch
          %382 = sbr.rel (%p380) target = $region32
        $region31: #{tpu_custom_call.1} parent=23 // pred_region
          %s383 = smul.u32 3, %s23
          %s385 = ssub.s32 384, 384
          %386 = vsyncadd %s371, %s385
          %s387 = smul.addr %s383, 128
          %s388 = scalar_lea.hbm %s1, %s387
          %s389 = sshll.u32 %s374, 4
          %s390 = int_to_ptr.vmem [resolvable:$true] %s389
          %395 = dma.vmem_to_hbm [thread:$0]  %s390, 384, %s388, %s371, 128, 128, 8
        $region32: #{tpu_custom_call.1} parent=23 // pred_fallthru
          _
        // Predicated region
        $region33: #{tpu_custom_call.1} parent=23 // pred_check
          %p396 = pneg %p93
        $region34: #{tpu_custom_call.1} parent=23 // pred_check_branch
          %398 = sbr.rel (%p396) target = $region36
        $region35: #{tpu_custom_call.1} parent=23 // pred_region
          %s399 = smul.u32 3, %s23
          %s401 = ssub.s32 384, 384
          %402 = vsyncadd %s376, %s401
          %s403 = smul.addr %s399, 128
          %s404 = scalar_lea.hbm %s2, %s403
          %s405 = sshll.u32 %s379, 4
          %s406 = int_to_ptr.vmem [resolvable:$true] %s405
          %411 = dma.vmem_to_hbm [thread:$0]  %s406, 384, %s404, %s376, 128, 128, 8
        $region36: #{tpu_custom_call.1} parent=23 // pred_fallthru
          _
      $region24: #{tpu_custom_call.1} parent=5 // pred_fallthru
        _
      %p412 = scmp.le.s32.totalorder 2, %s18
      // Predicated region
      $region37: #{tpu_custom_call.1} parent=5 // pred_check
        %p413 = pneg %p412
      $region38: #{tpu_custom_call.1} parent=5 // pred_check_branch
        %415 = sbr.rel (%p413) target = $region40
      $region39: #{tpu_custom_call.1} parent=5 // pred_region
        %s416 = ssub.s32 %s18, 2
        // Predicated region
        $region41: #{tpu_custom_call.1} parent=39 // pred_check
          %p417 = pneg %p73
        $region42: #{tpu_custom_call.1} parent=39 // pred_check_branch
          %419 = sbr.rel (%p417) target = $region44
        $region43: #{tpu_custom_call.1} parent=39 // pred_region
          %s420 = sand.u32 %s58, 1
          %s421 = scalar_lea.sflag [#allocation4], %s420
          %s422 = sand.u32 %s58, 1
          %s423 = smul.addr %s422, 24
          %s424 = scalar_lea.vmem [#allocation5], %s423
          %425 = dma.done %s421, 384
        $region44: #{tpu_custom_call.1} parent=39 // pred_fallthru
          _
        // Predicated region
        $region45: #{tpu_custom_call.1} parent=39 // pred_check
          %p426 = pneg %p99
        $region46: #{tpu_custom_call.1} parent=39 // pred_check_branch
          %428 = sbr.rel (%p426) target = $region48
        $region47: #{tpu_custom_call.1} parent=39 // pred_region
          %s429 = sand.u32 %s84, 1
          %s430 = scalar_lea.sflag [#allocation7], %s429
          %s431 = sand.u32 %s84, 1
          %s432 = smul.addr %s431, 24
          %s433 = scalar_lea.vmem [#allocation6], %s432
          %434 = dma.done %s430, 384
        $region48: #{tpu_custom_call.1} parent=39 // pred_fallthru
          _
      $region40: #{tpu_custom_call.1} parent=5 // pred_fallthru
        _
    $region6: #{tpu_custom_call.1} parent=1 // loop_footer
      %s22 = sadd.s32 1, %s18
    $region7: #{tpu_custom_call.1} parent=1 // loop_footer_branch
      %17 = sbr.rel target = $region3
    $region8: #{tpu_custom_call.1} parent=1 // loop_exit
      _
    %435 = vsyncpa [#allocation3], 1
    %s436 = scalar_lea.sflag [#allocation3], 1
    %437 = vsyncpa %s436, 1
    %438 = vsyncpa [#allocation4], 1
    %s439 = scalar_lea.sflag [#allocation4], 1
    %440 = vsyncpa %s439, 1
    %441 = vsyncpa [#allocation7], 1
    %s442 = scalar_lea.sflag [#allocation7], 1
    %443 = vsyncpa %s442, 1

</llo_original>
